<compile_context>
chip_gen: v7x
topology: tpu7x:2x2x1
jax: 0.10.0
libtpu: 0.0.40
codegen_flags: <defaults>
</compile_context>

<pallas_src>
import functools

import jax
import jax.numpy as jnp
from jax.experimental import pallas as pl
from jax.experimental.pallas import tpu as pltpu


def _round_up(x, m):
    return (x + m - 1) // m * m


def _layernorm_relu(h, g, be, n_true, eps):
    """LayerNorm (over true feature count) + affine + ReLU on a padded tile."""
    # One-pass statistics: padded lanes of h are exactly zero, so they do not
    # perturb either sum; the divisor is the true (unpadded) feature count.
    inv_n = 1.0 / n_true
    mu = jnp.sum(h, axis=-1, keepdims=True) * inv_n
    ex2 = jnp.sum(h * h, axis=-1, keepdims=True) * inv_n
    var = jnp.maximum(ex2 - mu * mu, 0.0)
    inv = jax.lax.rsqrt(var + eps)              # EUP slot -> essentially free
    h = (h - mu) * inv
    h = h * g + be                              # gamma/beta zero-padded -> padded lanes = 0
    return jnp.maximum(h, 0.0)


def _actor_kernel(x_ref,
                  w1_ref, b1_ref, g1_ref, be1_ref,
                  w2_ref, b2_ref, g2_ref, be2_ref,
                  w3_ref, b3_ref,
                  o_ref, *, n1, n2, eps):
    x = x_ref[...]                                          # (TB, state_dim) f32

    # ---- linear1 (K = state_dim is tiny; keep f32) + LN1 + ReLU ----
    h = jnp.dot(x, w1_ref[...], preferred_element_type=jnp.float32) + b1_ref[...]
    h = _layernorm_relu(h, g1_ref[...], be1_ref[...], n1, eps)

    # ---- linear2 (bf16 MXU operands when enabled, f32 accumulate) + LN2 + ReLU ----
    h = jnp.dot(h.astype(w2_ref.dtype), w2_ref[...],
                preferred_element_type=jnp.float32) + b2_ref[...]
    h = _layernorm_relu(h, g2_ref[...], be2_ref[...], n2, eps)

    # ---- linear3 + tanh ----
    out = jnp.dot(h.astype(w3_ref.dtype), w3_ref[...],
                  preferred_element_type=jnp.float32) + b3_ref[...]
    # action_dim=2 -> masked lane store; cheap in absolute terms (accepted).
    o_ref[...] = jnp.tanh(out).astype(o_ref.dtype)


@functools.partial(jax.jit, static_argnames=("block_b", "use_bf16"))
def actor_forward(state, params, *, block_b=512, use_bf16=True):
    """state: (B, state_dim) f32. params: dict from init_params.

    use_bf16=True casts only the matmul operands of layers 2/3 to bf16
    (f32 accumulation, f32 LayerNorm/tanh) -- the recommended v6e/v7x path.
    use_bf16=False keeps everything f32 (exact PyTorch semantics / v5e).
    """
    B, state_dim = state.shape
    h1 = params["w1"].shape[1]
    h2 = params["w2"].shape[1]
    action_dim = params["w3"].shape[1]

    # Lane-align the hidden widths (400 -> 512, 300 -> 384) with zero padding.
    h1p = _round_up(h1, 128)
    h2p = _round_up(h2, 128)
    mm_dtype = jnp.bfloat16 if use_bf16 else jnp.float32

    w1 = jnp.pad(params["w1"], ((0, 0), (0, h1p - h1)))
    b1 = jnp.pad(params["b1"], ((0, 0), (0, h1p - h1)))
    g1 = jnp.pad(params["g1"], ((0, 0), (0, h1p - h1)))
    be1 = jnp.pad(params["be1"], ((0, 0), (0, h1p - h1)))
    w2 = jnp.pad(params["w2"], ((0, h1p - h1), (0, h2p - h2))).astype(mm_dtype)
    b2 = jnp.pad(params["b2"], ((0, 0), (0, h2p - h2)))
    g2 = jnp.pad(params["g2"], ((0, 0), (0, h2p - h2)))
    be2 = jnp.pad(params["be2"], ((0, 0), (0, h2p - h2)))
    w3 = jnp.pad(params["w3"], ((0, h2p - h2), (0, 0))).astype(mm_dtype)
    b3 = params["b3"]

    # Batch tiling: pad to a sublane multiple, then to a multiple of the tile.
    Bp = _round_up(B, 8)
    tb = min(block_b, Bp)
    Bp = _round_up(Bp, tb)
    x = state if Bp == B else jnp.pad(state, ((0, Bp - B), (0, 0)))
    grid = (Bp // tb,)

    kernel = functools.partial(_actor_kernel,
                               n1=float(h1), n2=float(h2), eps=1e-5)

    def resident(shape):  # weights / LN params: DMA'd once, VMEM-resident
        return pl.BlockSpec(shape, lambda i: (0, 0))

    out = pl.pallas_call(
        kernel,
        out_shape=jax.ShapeDtypeStruct((Bp, action_dim), jnp.float32),
        grid=grid,
        in_specs=[
            pl.BlockSpec((tb, state_dim), lambda i: (i, 0)),   # x: batch-tiled
            resident((state_dim, h1p)), resident((1, h1p)),
            resident((1, h1p)), resident((1, h1p)),
            resident((h1p, h2p)), resident((1, h2p)),
            resident((1, h2p)), resident((1, h2p)),
            resident((h2p, action_dim)), resident((1, action_dim)),
        ],
        out_specs=pl.BlockSpec((tb, action_dim), lambda i: (i, 0)),
        compiler_params=pltpu.CompilerParams(
            dimension_semantics=("parallel",)),                # megacore on v7x
    )(x, w1, b1, g1, be1, w2, b2, g2, be2, w3, b3)
    return out[:B]


def init_params(key, state_dim=3, action_dim=2, h1=400, h2=300, init_w=0.003):
    """Synthetic init mimicking the PyTorch module's __init__ (w3 uniform(-init_w, init_w),
    all other linears use the nn.Linear default; LN gamma=1, beta=0)."""
    ks = jax.random.split(key, 7)

    def linear_init(kw, kb, fan_in, fan_out):
        bound = 1.0 / jnp.sqrt(fan_in)
        w = jax.random.uniform(kw, (fan_in, fan_out), jnp.float32, -bound, bound)
        b = jax.random.uniform(kb, (1, fan_out), jnp.float32, -bound, bound)
        return w, b

    w1, b1 = linear_init(ks[0], ks[1], state_dim, h1)
    w2, b2 = linear_init(ks[2], ks[3], h1, h2)
    # linear3.weight.data.uniform_(-init_w, init_w); bias keeps nn.Linear default.
    w3 = jax.random.uniform(ks[4], (h2, action_dim), jnp.float32, -init_w, init_w)
    b3_bound = 1.0 / jnp.sqrt(h2)
    b3 = jax.random.uniform(ks[5], (1, action_dim), jnp.float32, -b3_bound, b3_bound)

    return {
        "w1": w1, "b1": b1,
        "g1": jnp.ones((1, h1), jnp.float32), "be1": jnp.zeros((1, h1), jnp.float32),
        "w2": w2, "b2": b2,
        "g2": jnp.ones((1, h2), jnp.float32), "be2": jnp.zeros((1, h2), jnp.float32),
        "w3": w3, "b3": b3,
    }


def actor_reference(state, p):
    """Plain-JAX f32 reference matching the PyTorch forward."""
    eps = 1e-5
    h = state @ p["w1"] + p["b1"]
    h = (h - h.mean(-1, keepdims=True)) / jnp.sqrt(h.var(-1, keepdims=True) + eps)
    h = jnp.maximum(h * p["g1"] + p["be1"], 0.0)
    h = h @ p["w2"] + p["b2"]
    h = (h - h.mean(-1, keepdims=True)) / jnp.sqrt(h.var(-1, keepdims=True) + eps)
    h = jnp.maximum(h * p["g2"] + p["be2"], 0.0)
    return jnp.tanh(h @ p["w3"] + p["b3"])


if __name__ == "__main__":
    key = jax.random.PRNGKey(0)
    kp, kx = jax.random.split(key)

    B, state_dim, action_dim = 2, 3, 2
    params = init_params(kp, state_dim=state_dim, action_dim=action_dim, h1=400, h2=300)
    state = jax.random.normal(kx, (B, state_dim), jnp.float32)

    ref = actor_reference(state, params)

    # Exact-semantics path (all-f32 matmuls): tight tolerance vs PyTorch math.
    out_f32 = jax.block_until_ready(actor_forward(state, params, use_bf16=False))
    assert out_f32.shape == (B, action_dim)
    assert jnp.allclose(out_f32, ref, atol=3e-5, rtol=1e-4), (out_f32, ref)

    # Fast path (bf16 MXU operands for layers 2/3, f32 LN/stats/tanh).
    out_bf16 = jax.block_until_ready(actor_forward(state, params, use_bf16=True))
    assert out_bf16.shape == (B, action_dim)
    assert jnp.allclose(out_bf16, ref, atol=5e-2, rtol=5e-2), (out_bf16, ref)

    print("KERNEL_OK")
</pallas_src>

<mosaic_0001>
module attributes {stable_mosaic.version = 11 : i64} {
  func.func @_actor_kernel(%arg0: i32, %arg1: memref<8x3xf32, #tpu.memory_space<vmem>>, %arg2: memref<3x512xf32, #tpu.memory_space<vmem>>, %arg3: memref<1x512xf32, #tpu.memory_space<vmem>>, %arg4: memref<1x512xf32, #tpu.memory_space<vmem>>, %arg5: memref<1x512xf32, #tpu.memory_space<vmem>>, %arg6: memref<512x384xf32, #tpu.memory_space<vmem>>, %arg7: memref<1x384xf32, #tpu.memory_space<vmem>>, %arg8: memref<1x384xf32, #tpu.memory_space<vmem>>, %arg9: memref<1x384xf32, #tpu.memory_space<vmem>>, %arg10: memref<384x2xf32, #tpu.memory_space<vmem>>, %arg11: memref<1x2xf32, #tpu.memory_space<vmem>>, %arg12: memref<8x2xf32, #tpu.memory_space<vmem>>) attributes {dimension_semantics = [#tpu.dimension_semantics<parallel>], iteration_bounds = array<i64: 1>, scalar_prefetch = 0 : i64, scratch_operands = 0 : i64, tpu.core_type = #tpu.core_type<tc>, window_params = [{transform_indices = @transform_0, window_bounds = array<i64: 8, 3>}, {pipeline_mode = #tpu.pipeline_mode<synchronous>, transform_indices = @transform_1, window_bounds = array<i64: 3, 512>}, {pipeline_mode = #tpu.pipeline_mode<synchronous>, transform_indices = @transform_2, window_bounds = array<i64: 1, 512>}, {pipeline_mode = #tpu.pipeline_mode<synchronous>, transform_indices = @transform_3, window_bounds = array<i64: 1, 512>}, {pipeline_mode = #tpu.pipeline_mode<synchronous>, transform_indices = @transform_4, window_bounds = array<i64: 1, 512>}, {pipeline_mode = #tpu.pipeline_mode<synchronous>, transform_indices = @transform_5, window_bounds = array<i64: 512, 384>}, {pipeline_mode = #tpu.pipeline_mode<synchronous>, transform_indices = @transform_6, window_bounds = array<i64: 1, 384>}, {pipeline_mode = #tpu.pipeline_mode<synchronous>, transform_indices = @transform_7, window_bounds = array<i64: 1, 384>}, {pipeline_mode = #tpu.pipeline_mode<synchronous>, transform_indices = @transform_8, window_bounds = array<i64: 1, 384>}, {pipeline_mode = #tpu.pipeline_mode<synchronous>, transform_indices = @transform_9, window_bounds = array<i64: 384, 2>}, {pipeline_mode = #tpu.pipeline_mode<synchronous>, transform_indices = @transform_10, window_bounds = array<i64: 1, 2>}, {transform_indices = @transform_11, window_bounds = array<i64: 8, 2>}]} {
    %c0 = arith.constant 0 : index
    %c0_0 = arith.constant 0 : index
    %0 = vector.load %arg1[%c0, %c0_0] : memref<8x3xf32, #tpu.memory_space<vmem>>, vector<8x3xf32>
    %c0_1 = arith.constant 0 : index
    %c0_2 = arith.constant 0 : index
    %1 = vector.load %arg2[%c0_1, %c0_2] : memref<3x512xf32, #tpu.memory_space<vmem>>, vector<3x512xf32>
    %cst = arith.constant dense<0.000000e+00> : vector<8x512xf32>
    %2 = tpu.matmul %0, %1, %cst {dimension_numbers = #tpu.dot_dimension_numbers<[1], [0], [0], [1], [0, 0, 1, 1], [], []>} : vector<8x3xf32>, vector<3x512xf32>, vector<8x512xf32> -> vector<8x512xf32>
    %c0_3 = arith.constant 0 : index
    %c0_4 = arith.constant 0 : index
    %3 = vector.load %arg3[%c0_3, %c0_4] : memref<1x512xf32, #tpu.memory_space<vmem>>, vector<1x512xf32>
    %4 = vector.broadcast %3 : vector<1x512xf32> to vector<8x512xf32>
    %5 = arith.addf %2, %4 : vector<8x512xf32>
    %c0_5 = arith.constant 0 : index
    %c0_6 = arith.constant 0 : index
    %6 = vector.load %arg4[%c0_5, %c0_6] : memref<1x512xf32, #tpu.memory_space<vmem>>, vector<1x512xf32>
    %c0_7 = arith.constant 0 : index
    %c0_8 = arith.constant 0 : index
    %7 = vector.load %arg5[%c0_7, %c0_8] : memref<1x512xf32, #tpu.memory_space<vmem>>, vector<1x512xf32>
    %cst_9 = arith.constant dense<0.000000e+00> : vector<8xf32>
    %8 = vector.multi_reduction <add>, %5, %cst_9 [1] : vector<8x512xf32> to vector<8xf32>
    %9 = vector.shape_cast %8 : vector<8xf32> to vector<8x1xf32>
    %cst_10 = arith.constant 2.500000e-03 : f32
    %10 = vector.broadcast %cst_10 : f32 to vector<8x1xf32>
    %11 = arith.mulf %9, %10 : vector<8x1xf32>
    %12 = arith.mulf %5, %5 : vector<8x512xf32>
    %cst_11 = arith.constant dense<0.000000e+00> : vector<8xf32>
    %13 = vector.multi_reduction <add>, %12, %cst_11 [1] : vector<8x512xf32> to vector<8xf32>
    %14 = vector.shape_cast %13 : vector<8xf32> to vector<8x1xf32>
    %cst_12 = arith.constant 2.500000e-03 : f32
    %15 = vector.broadcast %cst_12 : f32 to vector<8x1xf32>
    %16 = arith.mulf %14, %15 : vector<8x1xf32>
    %17 = arith.mulf %11, %11 : vector<8x1xf32>
    %18 = arith.subf %16, %17 : vector<8x1xf32>
    %cst_13 = arith.constant 0.000000e+00 : f32
    %19 = vector.broadcast %cst_13 : f32 to vector<8x1xf32>
    %20 = arith.maximumf %18, %19 : vector<8x1xf32>
    %cst_14 = arith.constant 9.99999974E-6 : f32
    %21 = vector.broadcast %cst_14 : f32 to vector<8x1xf32>
    %22 = arith.addf %20, %21 : vector<8x1xf32>
    %23 = math.rsqrt %22 : vector<8x1xf32>
    %24 = vector.broadcast %11 : vector<8x1xf32> to vector<8x512xf32>
    %25 = arith.subf %5, %24 : vector<8x512xf32>
    %26 = vector.broadcast %23 : vector<8x1xf32> to vector<8x512xf32>
    %27 = arith.mulf %25, %26 : vector<8x512xf32>
    %28 = vector.broadcast %6 : vector<1x512xf32> to vector<8x512xf32>
    %29 = arith.mulf %27, %28 : vector<8x512xf32>
    %30 = vector.broadcast %7 : vector<1x512xf32> to vector<8x512xf32>
    %31 = arith.addf %29, %30 : vector<8x512xf32>
    %cst_15 = arith.constant 0.000000e+00 : f32
    %32 = vector.broadcast %cst_15 : f32 to vector<8x512xf32>
    %33 = arith.maximumf %31, %32 : vector<8x512xf32>
    %c0_16 = arith.constant 0 : index
    %c0_17 = arith.constant 0 : index
    %34 = vector.load %arg6[%c0_16, %c0_17] : memref<512x384xf32, #tpu.memory_space<vmem>>, vector<512x384xf32>
    %cst_18 = arith.constant dense<0.000000e+00> : vector<8x384xf32>
    %35 = tpu.matmul %33, %34, %cst_18 {dimension_numbers = #tpu.dot_dimension_numbers<[1], [0], [0], [1], [0, 0, 1, 1], [], []>} : vector<8x512xf32>, vector<512x384xf32>, vector<8x384xf32> -> vector<8x384xf32>
    %c0_19 = arith.constant 0 : index
    %c0_20 = arith.constant 0 : index
    %36 = vector.load %arg7[%c0_19, %c0_20] : memref<1x384xf32, #tpu.memory_space<vmem>>, vector<1x384xf32>
    %37 = vector.broadcast %36 : vector<1x384xf32> to vector<8x384xf32>
    %38 = arith.addf %35, %37 : vector<8x384xf32>
    %c0_21 = arith.constant 0 : index
    %c0_22 = arith.constant 0 : index
    %39 = vector.load %arg8[%c0_21, %c0_22] : memref<1x384xf32, #tpu.memory_space<vmem>>, vector<1x384xf32>
    %c0_23 = arith.constant 0 : index
    %c0_24 = arith.constant 0 : index
    %40 = vector.load %arg9[%c0_23, %c0_24] : memref<1x384xf32, #tpu.memory_space<vmem>>, vector<1x384xf32>
    %cst_25 = arith.constant dense<0.000000e+00> : vector<8xf32>
    %41 = vector.multi_reduction <add>, %38, %cst_25 [1] : vector<8x384xf32> to vector<8xf32>
    %42 = vector.shape_cast %41 : vector<8xf32> to vector<8x1xf32>
    %cst_26 = arith.constant 0.00333333341 : f32
    %43 = vector.broadcast %cst_26 : f32 to vector<8x1xf32>
    %44 = arith.mulf %42, %43 : vector<8x1xf32>
    %45 = arith.mulf %38, %38 : vector<8x384xf32>
    %cst_27 = arith.constant dense<0.000000e+00> : vector<8xf32>
    %46 = vector.multi_reduction <add>, %45, %cst_27 [1] : vector<8x384xf32> to vector<8xf32>
    %47 = vector.shape_cast %46 : vector<8xf32> to vector<8x1xf32>
    %cst_28 = arith.constant 0.00333333341 : f32
    %48 = vector.broadcast %cst_28 : f32 to vector<8x1xf32>
    %49 = arith.mulf %47, %48 : vector<8x1xf32>
    %50 = arith.mulf %44, %44 : vector<8x1xf32>
    %51 = arith.subf %49, %50 : vector<8x1xf32>
    %cst_29 = arith.constant 0.000000e+00 : f32
    %52 = vector.broadcast %cst_29 : f32 to vector<8x1xf32>
    %53 = arith.maximumf %51, %52 : vector<8x1xf32>
    %cst_30 = arith.constant 9.99999974E-6 : f32
    %54 = vector.broadcast %cst_30 : f32 to vector<8x1xf32>
    %55 = arith.addf %53, %54 : vector<8x1xf32>
    %56 = math.rsqrt %55 : vector<8x1xf32>
    %57 = vector.broadcast %44 : vector<8x1xf32> to vector<8x384xf32>
    %58 = arith.subf %38, %57 : vector<8x384xf32>
    %59 = vector.broadcast %56 : vector<8x1xf32> to vector<8x384xf32>
    %60 = arith.mulf %58, %59 : vector<8x384xf32>
    %61 = vector.broadcast %39 : vector<1x384xf32> to vector<8x384xf32>
    %62 = arith.mulf %60, %61 : vector<8x384xf32>
    %63 = vector.broadcast %40 : vector<1x384xf32> to vector<8x384xf32>
    %64 = arith.addf %62, %63 : vector<8x384xf32>
    %cst_31 = arith.constant 0.000000e+00 : f32
    %65 = vector.broadcast %cst_31 : f32 to vector<8x384xf32>
    %66 = arith.maximumf %64, %65 : vector<8x384xf32>
    %c0_32 = arith.constant 0 : index
    %c0_33 = arith.constant 0 : index
    %67 = vector.load %arg10[%c0_32, %c0_33] : memref<384x2xf32, #tpu.memory_space<vmem>>, vector<384x2xf32>
    %cst_34 = arith.constant dense<0.000000e+00> : vector<8x2xf32>
    %68 = tpu.matmul %66, %67, %cst_34 {dimension_numbers = #tpu.dot_dimension_numbers<[1], [0], [0], [1], [0, 0, 1, 1], [], []>} : vector<8x384xf32>, vector<384x2xf32>, vector<8x2xf32> -> vector<8x2xf32>
    %c0_35 = arith.constant 0 : index
    %c0_36 = arith.constant 0 : index
    %69 = vector.load %arg11[%c0_35, %c0_36] : memref<1x2xf32, #tpu.memory_space<vmem>>, vector<1x2xf32>
    %70 = vector.broadcast %69 : vector<1x2xf32> to vector<8x2xf32>
    %71 = arith.addf %68, %70 : vector<8x2xf32>
    %72 = math.tanh %71 : vector<8x2xf32>
    %c0_37 = arith.constant 0 : index
    %c0_38 = arith.constant 0 : index
    %73 = vector.load %arg12[%c0_37, %c0_38] : memref<8x2xf32, #tpu.memory_space<vmem>>, vector<8x2xf32>
    tpu.vector_store %arg12[%c0_37, %c0_38], %72 {strides = array<i32>} : memref<8x2xf32, #tpu.memory_space<vmem>>, vector<8x2xf32>,
    return
  }
  func.func @transform_0(%arg0: i32) -> (i32, i32) {
    %c0_i32 = arith.constant 0 : i32
    %c0_i32_0 = arith.constant 0 : i32
    return %arg0, %c0_i32 : i32, i32
  }
  func.func @transform_1(%arg0: i32) -> (i32, i32) {
    %c0_i32 = arith.constant 0 : i32
    %c0_i32_0 = arith.constant 0 : i32
    %c0_i32_1 = arith.constant 0 : i32
    return %c0_i32, %c0_i32_0 : i32, i32
  }
  func.func @transform_2(%arg0: i32) -> (i32, i32) {
    %c0_i32 = arith.constant 0 : i32
    %c0_i32_0 = arith.constant 0 : i32
    %c0_i32_1 = arith.constant 0 : i32
    return %c0_i32, %c0_i32_0 : i32, i32
  }
  func.func @transform_3(%arg0: i32) -> (i32, i32) {
    %c0_i32 = arith.constant 0 : i32
    %c0_i32_0 = arith.constant 0 : i32
    %c0_i32_1 = arith.constant 0 : i32
    return %c0_i32, %c0_i32_0 : i32, i32
  }
  func.func @transform_4(%arg0: i32) -> (i32, i32) {
    %c0_i32 = arith.constant 0 : i32
    %c0_i32_0 = arith.constant 0 : i32
    %c0_i32_1 = arith.constant 0 : i32
    return %c0_i32, %c0_i32_0 : i32, i32
  }
  func.func @transform_5(%arg0: i32) -> (i32, i32) {
    %c0_i32 = arith.constant 0 : i32
    %c0_i32_0 = arith.constant 0 : i32
    %c0_i32_1 = arith.constant 0 : i32
    return %c0_i32, %c0_i32_0 : i32, i32
  }
  func.func @transform_6(%arg0: i32) -> (i32, i32) {
    %c0_i32 = arith.constant 0 : i32
    %c0_i32_0 = arith.constant 0 : i32
    %c0_i32_1 = arith.constant 0 : i32
    return %c0_i32, %c0_i32_0 : i32, i32
  }
  func.func @transform_7(%arg0: i32) -> (i32, i32) {
    %c0_i32 = arith.constant 0 : i32
    %c0_i32_0 = arith.constant 0 : i32
    %c0_i32_1 = arith.constant 0 : i32
    return %c0_i32, %c0_i32_0 : i32, i32
  }
  func.func @transform_8(%arg0: i32) -> (i32, i32) {
    %c0_i32 = arith.constant 0 : i32
    %c0_i32_0 = arith.constant 0 : i32
    %c0_i32_1 = arith.constant 0 : i32
    return %c0_i32, %c0_i32_0 : i32, i32
  }
  func.func @transform_9(%arg0: i32) -> (i32, i32) {
    %c0_i32 = arith.constant 0 : i32
    %c0_i32_0 = arith.constant 0 : i32
    %c0_i32_1 = arith.constant 0 : i32
    return %c0_i32, %c0_i32_0 : i32, i32
  }
  func.func @transform_10(%arg0: i32) -> (i32, i32) {
    %c0_i32 = arith.constant 0 : i32
    %c0_i32_0 = arith.constant 0 : i32
    %c0_i32_1 = arith.constant 0 : i32
    return %c0_i32, %c0_i32_0 : i32, i32
  }
  func.func @transform_11(%arg0: i32) -> (i32, i32) {
    %c0_i32 = arith.constant 0 : i32
    %c0_i32_0 = arith.constant 0 : i32
    return %arg0, %c0_i32 : i32, i32
  }
}

</mosaic_0001>

<llo_original>
// kernel: actor_forward.1
$region0: #{actor_forward.1}
  #allocation0 [shape = 'u32[]', space=smem, size = 0x4, offset = 0x4, fixed_abs, tag = 'smem constant byte address 0x4 - core index']
  #allocation1 [shape = 'u32[144,128]{1,0:T(1,128)}', space=vmem, size = 0x12000, scoped, tag = 'internal scratch']
  %s0 = inlined_call_operand.vmem [shape: f32[8,3], index: 0, kind: input, shape index: {}]
  %s1 = inlined_call_operand.vmem [shape: f32[3,512], index: 1, kind: input, shape index: {}]
  %s2 = inlined_call_operand.vmem [shape: f32[1,512], index: 2, kind: input, shape index: {}]
  %s3 = inlined_call_operand.vmem [shape: f32[1,512], index: 3, kind: input, shape index: {}]
  %s4 = inlined_call_operand.vmem [shape: f32[1,512], index: 4, kind: input, shape index: {}]
  %s5 = inlined_call_operand.vmem [shape: f32[512,384], index: 5, kind: input, shape index: {}]
  %s6 = inlined_call_operand.vmem [shape: f32[1,384], index: 6, kind: input, shape index: {}]
  %s7 = inlined_call_operand.vmem [shape: f32[1,384], index: 7, kind: input, shape index: {}]
  %s8 = inlined_call_operand.vmem [shape: f32[1,384], index: 8, kind: input, shape index: {}]
  %s9 = inlined_call_operand.vmem [shape: f32[384,2], index: 9, kind: input, shape index: {}]
  %s10 = inlined_call_operand.vmem [shape: f32[1,2], index: 10, kind: input, shape index: {}]
  %s11 = inlined_call_operand.vmem [shape: f32[8,2], index: 11, kind: output, shape index: {}]
  %s12 = sld [smem:[#allocation0]]
  $region54: #{actor_forward.1} parent=0
    _
  %s14 = ssub.s32 1, %s12
  %s15 = scalar_select 0, %s14, %s12
  // Predicated region
  $region2: #{actor_forward.1} parent=0 // pred_check
    _
  $region3: #{actor_forward.1} parent=0 // pred_check_branch
    %17 = sbr.rel (0) target = $region5
  $region4: #{actor_forward.1} parent=0 // pred_region
    _
  $region5: #{actor_forward.1} parent=0 // pred_fallthru
    _
  // Predicated region
  $region6: #{actor_forward.1} parent=0 // pred_check
    _
  $region7: #{actor_forward.1} parent=0 // pred_check_branch
    %19 = sbr.rel (0) target = $region9
  $region8: #{actor_forward.1} parent=0 // pred_region
    _
  $region9: #{actor_forward.1} parent=0 // pred_fallthru
    _
  // Predicated region
  $region10: #{actor_forward.1} parent=0 // pred_check
    _
  $region11: #{actor_forward.1} parent=0 // pred_check_branch
    %21 = sbr.rel (0) target = $region13
  $region12: #{actor_forward.1} parent=0 // pred_region
    _
  $region13: #{actor_forward.1} parent=0 // pred_fallthru
    _
  // Predicated region
  $region14: #{actor_forward.1} parent=0 // pred_check
    _
  $region15: #{actor_forward.1} parent=0 // pred_check_branch
    %23 = sbr.rel (0) target = $region17
  $region16: #{actor_forward.1} parent=0 // pred_region
    _
  $region17: #{actor_forward.1} parent=0 // pred_fallthru
    _
  // Predicated region
  $region18: #{actor_forward.1} parent=0 // pred_check
    _
  $region19: #{actor_forward.1} parent=0 // pred_check_branch
    %25 = sbr.rel (0) target = $region21
  $region20: #{actor_forward.1} parent=0 // pred_region
    _
  $region21: #{actor_forward.1} parent=0 // pred_fallthru
    _
  // Predicated region
  $region22: #{actor_forward.1} parent=0 // pred_check
    _
  $region23: #{actor_forward.1} parent=0 // pred_check_branch
    %27 = sbr.rel (0) target = $region25
  $region24: #{actor_forward.1} parent=0 // pred_region
    _
  $region25: #{actor_forward.1} parent=0 // pred_fallthru
    _
  // Predicated region
  $region26: #{actor_forward.1} parent=0 // pred_check
    _
  $region27: #{actor_forward.1} parent=0 // pred_check_branch
    %29 = sbr.rel (0) target = $region29
  $region28: #{actor_forward.1} parent=0 // pred_region
    _
  $region29: #{actor_forward.1} parent=0 // pred_fallthru
    _
  // Predicated region
  $region30: #{actor_forward.1} parent=0 // pred_check
    _
  $region31: #{actor_forward.1} parent=0 // pred_check_branch
    %31 = sbr.rel (0) target = $region33
  $region32: #{actor_forward.1} parent=0 // pred_region
    _
  $region33: #{actor_forward.1} parent=0 // pred_fallthru
    _
  // Predicated region
  $region34: #{actor_forward.1} parent=0 // pred_check
    _
  $region35: #{actor_forward.1} parent=0 // pred_check_branch
    %33 = sbr.rel (0) target = $region37
  $region36: #{actor_forward.1} parent=0 // pred_region
    _
  $region37: #{actor_forward.1} parent=0 // pred_fallthru
    _
  // Predicated region
  $region38: #{actor_forward.1} parent=0 // pred_check
    _
  $region39: #{actor_forward.1} parent=0 // pred_check_branch
    %35 = sbr.rel (0) target = $region41
  $region40: #{actor_forward.1} parent=0 // pred_region
    _
  $region41: #{actor_forward.1} parent=0 // pred_fallthru
    _
  // Predicated region
  $region42: #{actor_forward.1} parent=0 // pred_check
    _
  $region43: #{actor_forward.1} parent=0 // pred_check_branch
    %37 = sbr.rel (0) target = $region45
  $region44: #{actor_forward.1} parent=0 // pred_region
    _
  $region45: #{actor_forward.1} parent=0 // pred_fallthru
    _
  %v38 = vld [vmem:[%s0] sm:$0xff]
  %v39 = vld [vmem:[%s1] sm:$0x77]
  %v40 = vld [vmem:[%s1 + $0x8] sm:$0x77]
  %v41 = vld [vmem:[%s2] sm:$0xf]
  %v43 = vlaneseq
  %v44 = vshrl.u32 %v43, 7
  %v45 = vsub.s32 0, %v44
  %v46 = vrot.slane %v41, %v45
  %v47 = vlaneseq
  %v48 = vshrl.u32 %v47, 7
  %v49 = vsub.s32 1, %v48
  %v50 = vrot.slane %v41, %v49
  %v51 = vlaneseq
  %v52 = vshrl.u32 %v51, 7
  %v53 = vsub.s32 2, %v52
  %v54 = vrot.slane %v41, %v53
  %v55 = vlaneseq
  %v56 = vshrl.u32 %v55, 7
  %v57 = vsub.s32 3, %v56
  %v58 = vrot.slane %v41, %v57
  %v65 = vcombine.high %v39, %v39
  %v66 = vcombine.high %v40, %v40
  %vm67 = vcmask 23552
  %v69 = vsel %vm67, %v38, 0
  %vm71 = vcmask 1042432
  %v72 = vsel %vm71, %v39, 0
  %v74 = vsel %vm71, %v65, 0
  %v76 = vsel %vm71, %v40, 0
  %v78 = vsel %vm71, %v66, 0
  %80 = vmatprep.subr.mxu0 %v74
  %81 = vmatpush1.msra.mxu0 %v72
  %82 = vmatprep.subr.mxu0 0.0
  %83 = vmatpush1.msra.mxu0 0.0
  %84 = vmatprep.subr.mxu0 0.0
  %85 = vmatpush1.msra.mxu0 0.0
  %86 = vmatprep.subr.mxu0 0.0
  %87 = vmatpush1.msra.mxu0 0.0
  %88 = vmatprep.subr.mxu0 0.0
  %89 = vmatpush1.msra.mxu0 0.0
  %90 = vmatprep.subr.mxu0 0.0
  %91 = vmatpush1.msra.mxu0 0.0
  %92 = vmatprep.subr.mxu0 0.0
  %93 = vmatpush1.msra.mxu0 0.0
  %94 = vmatprep.subr.mxu0 0.0
  %95 = vmatpush1.msra.mxu0 0.0
  %96 = vmatprep.subr.mxu0 0.0
  %97 = vmatpush1.msra.mxu0 0.0
  %98 = vmatprep.subr.mxu0 0.0
  %99 = vmatpush1.msra.mxu0 0.0
  %100 = vmatprep.subr.mxu0 0.0
  %101 = vmatpush1.msra.mxu0 0.0
  %102 = vmatprep.subr.mxu0 0.0
  %103 = vmatpush1.msra.mxu0 0.0
  %104 = vmatprep.subr.mxu0 0.0
  %105 = vmatpush1.msra.mxu0 0.0
  %106 = vmatprep.subr.mxu0 0.0
  %107 = vmatpush1.msra.mxu0 0.0
  %108 = vmatprep.subr.mxu0 0.0
  %109 = vmatpush1.msra.mxu0 0.0
  %110 = vmatprep.subr.mxu0 0.0
  %111 = vmatpush1.msra.mxu0 0.0
  %112 = vmatprep.subr.mxu0 0.0
  %113 = vmatpush1.msra.mxu0 0.0
  %114 = vmatprep.subr.mxu0 0.0
  %115 = vmatpush1.msra.mxu0 0.0
  %116 = vmatprep.subr.mxu0 0.0
  %117 = vmatpush1.msra.mxu0 0.0
  %118 = vmatprep.subr.mxu0 0.0
  %119 = vmatpush1.msra.mxu0 0.0
  %120 = vmatprep.subr.mxu0 0.0
  %121 = vmatpush1.msra.mxu0 0.0
  %122 = vmatprep.subr.mxu0 0.0
  %123 = vmatpush1.msra.mxu0 0.0
  %124 = vmatprep.subr.mxu0 0.0
  %125 = vmatpush1.msra.mxu0 0.0
  %126 = vmatprep.subr.mxu0 0.0
  %127 = vmatpush1.msra.mxu0 0.0
  %128 = vmatprep.subr.mxu0 0.0
  %129 = vmatpush1.msra.mxu0 0.0
  %130 = vmatprep.subr.mxu0 0.0
  %131 = vmatpush1.msra.mxu0 0.0
  %132 = vmatprep.subr.mxu0 0.0
  %133 = vmatpush1.msra.mxu0 0.0
  %134 = vmatprep.subr.mxu0 0.0
  %135 = vmatpush1.msra.mxu0 0.0
  %136 = vmatprep.subr.mxu0 0.0
  %137 = vmatpush1.msra.mxu0 0.0
  %138 = vmatprep.subr.mxu0 0.0
  %139 = vmatpush1.msra.mxu0 0.0
  %140 = vmatprep.subr.mxu0 0.0
  %141 = vmatpush1.msra.mxu0 0.0
  %142 = vmatprep.subr.mxu0 0.0
  %143 = vmatpush1.msra.mxu0 0.0
  %144 = vmatprep.mubr.f32.mxu0 0.0
  %145 = vmatmul.mubr.f32.gmra.mrb[0].mxu0 %v69
  %v146 = vpop.f32.mrb[0].mxu0
  %v147 = vadd.f32 %v46, %v146
  %v148 = vpop.f32.mrb[0].mxu0
  %v149 = vadd.f32 %v50, %v148
  %150 = vdwg.mxu0
  %151 = vmatprep.subr.mxu0 %v78
  %152 = vmatpush1.msra.mxu0 %v76
  %153 = vmatprep.subr.mxu0 0.0
  %154 = vmatpush1.msra.mxu0 0.0
  %155 = vmatprep.subr.mxu0 0.0
  %156 = vmatpush1.msra.mxu0 0.0
  %157 = vmatprep.subr.mxu0 0.0
  %158 = vmatpush1.msra.mxu0 0.0
  %159 = vmatprep.subr.mxu0 0.0
  %160 = vmatpush1.msra.mxu0 0.0
  %161 = vmatprep.subr.mxu0 0.0
  %162 = vmatpush1.msra.mxu0 0.0
  %163 = vmatprep.subr.mxu0 0.0
  %164 = vmatpush1.msra.mxu0 0.0
  %165 = vmatprep.subr.mxu0 0.0
  %166 = vmatpush1.msra.mxu0 0.0
  %167 = vmatprep.subr.mxu0 0.0
  %168 = vmatpush1.msra.mxu0 0.0
  %169 = vmatprep.subr.mxu0 0.0
  %170 = vmatpush1.msra.mxu0 0.0
  %171 = vmatprep.subr.mxu0 0.0
  %172 = vmatpush1.msra.mxu0 0.0
  %173 = vmatprep.subr.mxu0 0.0
  %174 = vmatpush1.msra.mxu0 0.0
  %175 = vmatprep.subr.mxu0 0.0
  %176 = vmatpush1.msra.mxu0 0.0
  %177 = vmatprep.subr.mxu0 0.0
  %178 = vmatpush1.msra.mxu0 0.0
  %179 = vmatprep.subr.mxu0 0.0
  %180 = vmatpush1.msra.mxu0 0.0
  %181 = vmatprep.subr.mxu0 0.0
  %182 = vmatpush1.msra.mxu0 0.0
  %183 = vmatprep.subr.mxu0 0.0
  %184 = vmatpush1.msra.mxu0 0.0
  %185 = vmatprep.subr.mxu0 0.0
  %186 = vmatpush1.msra.mxu0 0.0
  %187 = vmatprep.subr.mxu0 0.0
  %188 = vmatpush1.msra.mxu0 0.0
  %189 = vmatprep.subr.mxu0 0.0
  %190 = vmatpush1.msra.mxu0 0.0
  %191 = vmatprep.subr.mxu0 0.0
  %192 = vmatpush1.msra.mxu0 0.0
  %193 = vmatprep.subr.mxu0 0.0
  %194 = vmatpush1.msra.mxu0 0.0
  %195 = vmatprep.subr.mxu0 0.0
  %196 = vmatpush1.msra.mxu0 0.0
  %197 = vmatprep.subr.mxu0 0.0
  %198 = vmatpush1.msra.mxu0 0.0
  %199 = vmatprep.subr.mxu0 0.0
  %200 = vmatpush1.msra.mxu0 0.0
  %201 = vmatprep.subr.mxu0 0.0
  %202 = vmatpush1.msra.mxu0 0.0
  %203 = vmatprep.subr.mxu0 0.0
  %204 = vmatpush1.msra.mxu0 0.0
  %205 = vmatprep.subr.mxu0 0.0
  %206 = vmatpush1.msra.mxu0 0.0
  %207 = vmatprep.subr.mxu0 0.0
  %208 = vmatpush1.msra.mxu0 0.0
  %209 = vmatprep.subr.mxu0 0.0
  %210 = vmatpush1.msra.mxu0 0.0
  %211 = vmatprep.subr.mxu0 0.0
  %212 = vmatpush1.msra.mxu0 0.0
  %213 = vmatprep.subr.mxu0 0.0
  %214 = vmatpush1.msra.mxu0 0.0
  %215 = vmatprep.mubr.f32.mxu0 0.0
  %216 = vmatmul.mubr.f32.gmra.mrb[0].mxu0 %v69
  %v217 = vpop.f32.mrb[0].mxu0
  %v218 = vadd.f32 %v54, %v217
  %v219 = vpop.f32.mrb[0].mxu0
  %v220 = vadd.f32 %v58, %v219
  %221 = vdwg.mxu0
  %v222 = vld [vmem:[%s3] sm:$0xf]
  %v223 = vld [vmem:[%s4] sm:$0xf]
  %v224 = vadd.f32 %v147, %v149
  %v225 = vadd.f32 %v224, %v218
  %v226 = vadd.f32 %v225, %v220
  %227 = vadd.xlane.f32.xlu0 %v226
  %v228 = vpop.xlane.xlu0 %227
  %v229 = vmul.f32 %v228, 0.0025
  %v230 = vmul.f32 %v147, %v147
  %v231 = vmul.f32 %v149, %v149
  %v232 = vmul.f32 %v218, %v218
  %v233 = vmul.f32 %v220, %v220
  %v234 = vadd.f32 %v230, %v231
  %v235 = vadd.f32 %v234, %v232
  %v236 = vadd.f32 %v235, %v233
  %237 = vadd.xlane.f32.xlu0 %v236
  %v238 = vpop.xlane.xlu0 %237
  %v239 = vmul.f32 %v238, 0.0025
  %v240 = vmul.f32 %v229, %v229
  %v241 = vsub.f32 %v239, %v240
  %v242 = vmax.f32 %v241, 0.0
  %v243 = vadd.f32 %v242, 1e-05
  %v244 = vrsqrt.pop %v243
  %v245 = vsub.f32 %v147, %v229
  %v246 = vsub.f32 %v149, %v229
  %v247 = vsub.f32 %v218, %v229
  %v248 = vsub.f32 %v220, %v229
  %v249 = vmul.f32 %v245, %v244
  %v250 = vmul.f32 %v246, %v244
  %v251 = vmul.f32 %v247, %v244
  %v252 = vmul.f32 %v248, %v244
  %v254 = vlaneseq
  %v255 = vshrl.u32 %v254, 7
  %v256 = vsub.s32 0, %v255
  %v257 = vrot.slane %v222, %v256
  %v258 = vlaneseq
  %v259 = vshrl.u32 %v258, 7
  %v260 = vsub.s32 1, %v259
  %v261 = vrot.slane %v222, %v260
  %v262 = vlaneseq
  %v263 = vshrl.u32 %v262, 7
  %v264 = vsub.s32 2, %v263
  %v265 = vrot.slane %v222, %v264
  %v266 = vlaneseq
  %v267 = vshrl.u32 %v266, 7
  %v268 = vsub.s32 3, %v267
  %v269 = vrot.slane %v222, %v268
  %v274 = vmul.f32 %v249, %v257
  %v275 = vmul.f32 %v250, %v261
  %v276 = vmul.f32 %v251, %v265
  %v277 = vmul.f32 %v252, %v269
  %v279 = vlaneseq
  %v280 = vshrl.u32 %v279, 7
  %v281 = vsub.s32 0, %v280
  %v282 = vrot.slane %v223, %v281
  %v283 = vlaneseq
  %v284 = vshrl.u32 %v283, 7
  %v285 = vsub.s32 1, %v284
  %v286 = vrot.slane %v223, %v285
  %v287 = vlaneseq
  %v288 = vshrl.u32 %v287, 7
  %v289 = vsub.s32 2, %v288
  %v290 = vrot.slane %v223, %v289
  %v291 = vlaneseq
  %v292 = vshrl.u32 %v291, 7
  %v293 = vsub.s32 3, %v292
  %v294 = vrot.slane %v223, %v293
  %v299 = vadd.f32 %v274, %v282
  %v300 = vadd.f32 %v275, %v286
  %v301 = vadd.f32 %v276, %v290
  %v302 = vadd.f32 %v277, %v294
  %v303 = vmax.f32 %v299, 0.0
  %v304 = vmax.f32 %v300, 0.0
  %v305 = vmax.f32 %v301, 0.0
  %v306 = vmax.f32 %v302, 0.0
  %v307 = vld [vmem:[%s5] sm:$0xff]
  %v308 = vld [vmem:[%s5 + $0x8] sm:$0xff]
  %v309 = vld [vmem:[%s5 + $0x10] sm:$0xff]
  %v310 = vld [vmem:[%s5 + $0x18] sm:$0xff]
  %v311 = vld [vmem:[%s5 + $0x20] sm:$0xff]
  %v312 = vld [vmem:[%s5 + $0x28] sm:$0xff]
  %v313 = vld [vmem:[%s5 + $0x30] sm:$0xff]
  %v314 = vld [vmem:[%s5 + $0x38] sm:$0xff]
  %v315 = vld [vmem:[%s5 + $0x40] sm:$0xff]
  %v316 = vld [vmem:[%s5 + $0x48] sm:$0xff]
  %v317 = vld [vmem:[%s5 + $0x50] sm:$0xff]
  %v318 = vld [vmem:[%s5 + $0x58] sm:$0xff]
  %v319 = vld [vmem:[%s5 + $0x60] sm:$0xff]
  %v320 = vld [vmem:[%s5 + $0x68] sm:$0xff]
  %v321 = vld [vmem:[%s5 + $0x70] sm:$0xff]
  %v322 = vld [vmem:[%s5 + $0x78] sm:$0xff]
  %v323 = vld [vmem:[%s5 + $0x80] sm:$0xff]
  %v324 = vld [vmem:[%s5 + $0x88] sm:$0xff]
  %v325 = vld [vmem:[%s5 + $0x90] sm:$0xff]
  %v326 = vld [vmem:[%s5 + $0x98] sm:$0xff]
  %v327 = vld [vmem:[%s5 + $0xa0] sm:$0xff]
  %v328 = vld [vmem:[%s5 + $0xa8] sm:$0xff]
  %v329 = vld [vmem:[%s5 + $0xb0] sm:$0xff]
  %v330 = vld [vmem:[%s5 + $0xb8] sm:$0xff]
  %v331 = vld [vmem:[%s5 + $0xc0] sm:$0xff]
  %v332 = vld [vmem:[%s5 + $0xc8] sm:$0xff]
  %v333 = vld [vmem:[%s5 + $0xd0] sm:$0xff]
  %v334 = vld [vmem:[%s5 + $0xd8] sm:$0xff]
  %v335 = vld [vmem:[%s5 + $0xe0] sm:$0xff]
  %v336 = vld [vmem:[%s5 + $0xe8] sm:$0xff]
  %v337 = vld [vmem:[%s5 + $0xf0] sm:$0xff]
  %v338 = vld [vmem:[%s5 + $0xf8] sm:$0xff]
  %v339 = vld [vmem:[%s5 + $0x100] sm:$0xff]
  %v340 = vld [vmem:[%s5 + $0x108] sm:$0xff]
  %v341 = vld [vmem:[%s5 + $0x110] sm:$0xff]
  %v342 = vld [vmem:[%s5 + $0x118] sm:$0xff]
  %v343 = vld [vmem:[%s5 + $0x120] sm:$0xff]
  %v344 = vld [vmem:[%s5 + $0x128] sm:$0xff]
  %v345 = vld [vmem:[%s5 + $0x130] sm:$0xff]
  %v346 = vld [vmem:[%s5 + $0x138] sm:$0xff]
  %v347 = vld [vmem:[%s5 + $0x140] sm:$0xff]
  %v348 = vld [vmem:[%s5 + $0x148] sm:$0xff]
  %v349 = vld [vmem:[%s5 + $0x150] sm:$0xff]
  %v350 = vld [vmem:[%s5 + $0x158] sm:$0xff]
  %v351 = vld [vmem:[%s5 + $0x160] sm:$0xff]
  %v352 = vld [vmem:[%s5 + $0x168] sm:$0xff]
  %v353 = vld [vmem:[%s5 + $0x170] sm:$0xff]
  %v354 = vld [vmem:[%s5 + $0x178] sm:$0xff]
  %v355 = vld [vmem:[%s5 + $0x180] sm:$0xff]
  %v356 = vld [vmem:[%s5 + $0x188] sm:$0xff]
  %v357 = vld [vmem:[%s5 + $0x190] sm:$0xff]
  %v358 = vld [vmem:[%s5 + $0x198] sm:$0xff]
  %v359 = vld [vmem:[%s5 + $0x1a0] sm:$0xff]
  %v360 = vld [vmem:[%s5 + $0x1a8] sm:$0xff]
  %v361 = vld [vmem:[%s5 + $0x1b0] sm:$0xff]
  %v362 = vld [vmem:[%s5 + $0x1b8] sm:$0xff]
  %v363 = vld [vmem:[%s5 + $0x1c0] sm:$0xff]
  %v364 = vld [vmem:[%s5 + $0x1c8] sm:$0xff]
  %v365 = vld [vmem:[%s5 + $0x1d0] sm:$0xff]
  %v366 = vld [vmem:[%s5 + $0x1d8] sm:$0xff]
  %v367 = vld [vmem:[%s5 + $0x1e0] sm:$0xff]
  %v368 = vld [vmem:[%s5 + $0x1e8] sm:$0xff]
  %v369 = vld [vmem:[%s5 + $0x1f0] sm:$0xff]
  %v370 = vld [vmem:[%s5 + $0x1f8] sm:$0xff]
  %v371 = vld [vmem:[%s5 + $0x200] sm:$0xff]
  %v372 = vld [vmem:[%s5 + $0x208] sm:$0xff]
  %v373 = vld [vmem:[%s5 + $0x210] sm:$0xff]
  %v374 = vld [vmem:[%s5 + $0x218] sm:$0xff]
  %v375 = vld [vmem:[%s5 + $0x220] sm:$0xff]
  %v376 = vld [vmem:[%s5 + $0x228] sm:$0xff]
  %v377 = vld [vmem:[%s5 + $0x230] sm:$0xff]
  %v378 = vld [vmem:[%s5 + $0x238] sm:$0xff]
  %v379 = vld [vmem:[%s5 + $0x240] sm:$0xff]
  %v380 = vld [vmem:[%s5 + $0x248] sm:$0xff]
  %v381 = vld [vmem:[%s5 + $0x250] sm:$0xff]
  %v382 = vld [vmem:[%s5 + $0x258] sm:$0xff]
  %v383 = vld [vmem:[%s5 + $0x260] sm:$0xff]
  %v384 = vld [vmem:[%s5 + $0x268] sm:$0xff]
  %v385 = vld [vmem:[%s5 + $0x270] sm:$0xff]
  %v386 = vld [vmem:[%s5 + $0x278] sm:$0xff]
  %v387 = vld [vmem:[%s5 + $0x280] sm:$0xff]
  %v388 = vld [vmem:[%s5 + $0x288] sm:$0xff]
  %v389 = vld [vmem:[%s5 + $0x290] sm:$0xff]
  %v390 = vld [vmem:[%s5 + $0x298] sm:$0xff]
  %v391 = vld [vmem:[%s5 + $0x2a0] sm:$0xff]
  %v392 = vld [vmem:[%s5 + $0x2a8] sm:$0xff]
  %v393 = vld [vmem:[%s5 + $0x2b0] sm:$0xff]
  %v394 = vld [vmem:[%s5 + $0x2b8] sm:$0xff]
  %v395 = vld [vmem:[%s5 + $0x2c0] sm:$0xff]
  %v396 = vld [vmem:[%s5 + $0x2c8] sm:$0xff]
  %v397 = vld [vmem:[%s5 + $0x2d0] sm:$0xff]
  %v398 = vld [vmem:[%s5 + $0x2d8] sm:$0xff]
  %v399 = vld [vmem:[%s5 + $0x2e0] sm:$0xff]
  %v400 = vld [vmem:[%s5 + $0x2e8] sm:$0xff]
  %v401 = vld [vmem:[%s5 + $0x2f0] sm:$0xff]
  %v402 = vld [vmem:[%s5 + $0x2f8] sm:$0xff]
  %v403 = vld [vmem:[%s5 + $0x300] sm:$0xff]
  %v404 = vld [vmem:[%s5 + $0x308] sm:$0xff]
  %v405 = vld [vmem:[%s5 + $0x310] sm:$0xff]
  %v406 = vld [vmem:[%s5 + $0x318] sm:$0xff]
  %v407 = vld [vmem:[%s5 + $0x320] sm:$0xff]
  %v408 = vld [vmem:[%s5 + $0x328] sm:$0xff]
  %v409 = vld [vmem:[%s5 + $0x330] sm:$0xff]
  %v410 = vld [vmem:[%s5 + $0x338] sm:$0xff]
  %v411 = vld [vmem:[%s5 + $0x340] sm:$0xff]
  %v412 = vld [vmem:[%s5 + $0x348] sm:$0xff]
  %v413 = vld [vmem:[%s5 + $0x350] sm:$0xff]
  %v414 = vld [vmem:[%s5 + $0x358] sm:$0xff]
  %v415 = vld [vmem:[%s5 + $0x360] sm:$0xff]
  %v416 = vld [vmem:[%s5 + $0x368] sm:$0xff]
  %v417 = vld [vmem:[%s5 + $0x370] sm:$0xff]
  %v418 = vld [vmem:[%s5 + $0x378] sm:$0xff]
  %v419 = vld [vmem:[%s5 + $0x380] sm:$0xff]
  %v420 = vld [vmem:[%s5 + $0x388] sm:$0xff]
  %v421 = vld [vmem:[%s5 + $0x390] sm:$0xff]
  %v422 = vld [vmem:[%s5 + $0x398] sm:$0xff]
  %v423 = vld [vmem:[%s5 + $0x3a0] sm:$0xff]
  %v424 = vld [vmem:[%s5 + $0x3a8] sm:$0xff]
  %v425 = vld [vmem:[%s5 + $0x3b0] sm:$0xff]
  %v426 = vld [vmem:[%s5 + $0x3b8] sm:$0xff]
  %v427 = vld [vmem:[%s5 + $0x3c0] sm:$0xff]
  %v428 = vld [vmem:[%s5 + $0x3c8] sm:$0xff]
  %v429 = vld [vmem:[%s5 + $0x3d0] sm:$0xff]
  %v430 = vld [vmem:[%s5 + $0x3d8] sm:$0xff]
  %v431 = vld [vmem:[%s5 + $0x3e0] sm:$0xff]
  %v432 = vld [vmem:[%s5 + $0x3e8] sm:$0xff]
  %v433 = vld [vmem:[%s5 + $0x3f0] sm:$0xff]
  %v434 = vld [vmem:[%s5 + $0x3f8] sm:$0xff]
  %v435 = vld [vmem:[%s5 + $0x400] sm:$0xff]
  %v436 = vld [vmem:[%s5 + $0x408] sm:$0xff]
  %v437 = vld [vmem:[%s5 + $0x410] sm:$0xff]
  %v438 = vld [vmem:[%s5 + $0x418] sm:$0xff]
  %v439 = vld [vmem:[%s5 + $0x420] sm:$0xff]
  %v440 = vld [vmem:[%s5 + $0x428] sm:$0xff]
  %v441 = vld [vmem:[%s5 + $0x430] sm:$0xff]
  %v442 = vld [vmem:[%s5 + $0x438] sm:$0xff]
  %v443 = vld [vmem:[%s5 + $0x440] sm:$0xff]
  %v444 = vld [vmem:[%s5 + $0x448] sm:$0xff]
  %v445 = vld [vmem:[%s5 + $0x450] sm:$0xff]
  %v446 = vld [vmem:[%s5 + $0x458] sm:$0xff]
  %v447 = vld [vmem:[%s5 + $0x460] sm:$0xff]
  %v448 = vld [vmem:[%s5 + $0x468] sm:$0xff]
  %v449 = vld [vmem:[%s5 + $0x470] sm:$0xff]
  %v450 = vld [vmem:[%s5 + $0x478] sm:$0xff]
  %v451 = vld [vmem:[%s5 + $0x480] sm:$0xff]
  %v452 = vld [vmem:[%s5 + $0x488] sm:$0xff]
  %v453 = vld [vmem:[%s5 + $0x490] sm:$0xff]
  %v454 = vld [vmem:[%s5 + $0x498] sm:$0xff]
  %v455 = vld [vmem:[%s5 + $0x4a0] sm:$0xff]
  %v456 = vld [vmem:[%s5 + $0x4a8] sm:$0xff]
  %v457 = vld [vmem:[%s5 + $0x4b0] sm:$0xff]
  %v458 = vld [vmem:[%s5 + $0x4b8] sm:$0xff]
  %v459 = vld [vmem:[%s5 + $0x4c0] sm:$0xff]
  %v460 = vld [vmem:[%s5 + $0x4c8] sm:$0xff]
  %v461 = vld [vmem:[%s5 + $0x4d0] sm:$0xff]
  %v462 = vld [vmem:[%s5 + $0x4d8] sm:$0xff]
  %v463 = vld [vmem:[%s5 + $0x4e0] sm:$0xff]
  %v464 = vld [vmem:[%s5 + $0x4e8] sm:$0xff]
  %v465 = vld [vmem:[%s5 + $0x4f0] sm:$0xff]
  %v466 = vld [vmem:[%s5 + $0x4f8] sm:$0xff]
  %v467 = vld [vmem:[%s5 + $0x500] sm:$0xff]
  %v468 = vld [vmem:[%s5 + $0x508] sm:$0xff]
  %v469 = vld [vmem:[%s5 + $0x510] sm:$0xff]
  %v470 = vld [vmem:[%s5 + $0x518] sm:$0xff]
  %v471 = vld [vmem:[%s5 + $0x520] sm:$0xff]
  %v472 = vld [vmem:[%s5 + $0x528] sm:$0xff]
  %v473 = vld [vmem:[%s5 + $0x530] sm:$0xff]
  %v474 = vld [vmem:[%s5 + $0x538] sm:$0xff]
  %v475 = vld [vmem:[%s5 + $0x540] sm:$0xff]
  %v476 = vld [vmem:[%s5 + $0x548] sm:$0xff]
  %v477 = vld [vmem:[%s5 + $0x550] sm:$0xff]
  %v478 = vld [vmem:[%s5 + $0x558] sm:$0xff]
  %v479 = vld [vmem:[%s5 + $0x560] sm:$0xff]
  %v480 = vld [vmem:[%s5 + $0x568] sm:$0xff]
  %v481 = vld [vmem:[%s5 + $0x570] sm:$0xff]
  %v482 = vld [vmem:[%s5 + $0x578] sm:$0xff]
  %v483 = vld [vmem:[%s5 + $0x580] sm:$0xff]
  %v484 = vld [vmem:[%s5 + $0x588] sm:$0xff]
  %v485 = vld [vmem:[%s5 + $0x590] sm:$0xff]
  %v486 = vld [vmem:[%s5 + $0x598] sm:$0xff]
  %v487 = vld [vmem:[%s5 + $0x5a0] sm:$0xff]
  %v488 = vld [vmem:[%s5 + $0x5a8] sm:$0xff]
  %v489 = vld [vmem:[%s5 + $0x5b0] sm:$0xff]
  %v490 = vld [vmem:[%s5 + $0x5b8] sm:$0xff]
  %v491 = vld [vmem:[%s5 + $0x5c0] sm:$0xff]
  %v492 = vld [vmem:[%s5 + $0x5c8] sm:$0xff]
  %v493 = vld [vmem:[%s5 + $0x5d0] sm:$0xff]
  %v494 = vld [vmem:[%s5 + $0x5d8] sm:$0xff]
  %v495 = vld [vmem:[%s5 + $0x5e0] sm:$0xff]
  %v496 = vld [vmem:[%s5 + $0x5e8] sm:$0xff]
  %v497 = vld [vmem:[%s5 + $0x5f0] sm:$0xff]
  %v498 = vld [vmem:[%s5 + $0x5f8] sm:$0xff]
  %v499 = vld [vmem:[%s6] sm:$0x7]
  %v501 = vlaneseq
  %v502 = vshrl.u32 %v501, 7
  %v503 = vsub.s32 0, %v502
  %v504 = vrot.slane %v499, %v503
  %v505 = vlaneseq
  %v506 = vshrl.u32 %v505, 7
  %v507 = vsub.s32 1, %v506
  %v508 = vrot.slane %v499, %v507
  %v509 = vlaneseq
  %v510 = vshrl.u32 %v509, 7
  %v511 = vsub.s32 2, %v510
  %v512 = vrot.slane %v499, %v511
  %516 = vmatprep.subr.mxu0 %v308
  %517 = vmatpush1.msra.mxu0 %v307
  %518 = vmatprep.subr.mxu0 %v311
  %519 = vmatpush1.msra.mxu0 %v310
  %520 = vmatprep.subr.mxu0 %v314
  %521 = vmatpush1.msra.mxu0 %v313
  %522 = vmatprep.subr.mxu0 %v317
  %523 = vmatpush1.msra.mxu0 %v316
  %524 = vmatprep.subr.mxu0 %v320
  %525 = vmatpush1.msra.mxu0 %v319
  %526 = vmatprep.subr.mxu0 %v323
  %527 = vmatpush1.msra.mxu0 %v322
  %528 = vmatprep.subr.mxu0 %v326
  %529 = vmatpush1.msra.mxu0 %v325
  %530 = vmatprep.subr.mxu0 %v329
  %531 = vmatpush1.msra.mxu0 %v328
  %532 = vmatprep.subr.mxu0 %v332
  %533 = vmatpush1.msra.mxu0 %v331
  %534 = vmatprep.subr.mxu0 %v335
  %535 = vmatpush1.msra.mxu0 %v334
  %536 = vmatprep.subr.mxu0 %v338
  %537 = vmatpush1.msra.mxu0 %v337
  %538 = vmatprep.subr.mxu0 %v341
  %539 = vmatpush1.msra.mxu0 %v340
  %540 = vmatprep.subr.mxu0 %v344
  %541 = vmatpush1.msra.mxu0 %v343
  %542 = vmatprep.subr.mxu0 %v347
  %543 = vmatpush1.msra.mxu0 %v346
  %544 = vmatprep.subr.mxu0 %v350
  %545 = vmatpush1.msra.mxu0 %v349
  %546 = vmatprep.subr.mxu0 %v353
  %547 = vmatpush1.msra.mxu0 %v352
  %548 = vmatprep.subr.mxu0 %v356
  %549 = vmatpush1.msra.mxu0 %v355
  %550 = vmatprep.subr.mxu0 %v359
  %551 = vmatpush1.msra.mxu0 %v358
  %552 = vmatprep.subr.mxu0 %v362
  %553 = vmatpush1.msra.mxu0 %v361
  %554 = vmatprep.subr.mxu0 %v365
  %555 = vmatpush1.msra.mxu0 %v364
  %556 = vmatprep.subr.mxu0 %v368
  %557 = vmatpush1.msra.mxu0 %v367
  %558 = vmatprep.subr.mxu0 %v371
  %559 = vmatpush1.msra.mxu0 %v370
  %560 = vmatprep.subr.mxu0 %v374
  %561 = vmatpush1.msra.mxu0 %v373
  %562 = vmatprep.subr.mxu0 %v377
  %563 = vmatpush1.msra.mxu0 %v376
  %564 = vmatprep.subr.mxu0 %v380
  %565 = vmatpush1.msra.mxu0 %v379
  %566 = vmatprep.subr.mxu0 %v383
  %567 = vmatpush1.msra.mxu0 %v382
  %568 = vmatprep.subr.mxu0 %v386
  %569 = vmatpush1.msra.mxu0 %v385
  %570 = vmatprep.subr.mxu0 %v389
  %571 = vmatpush1.msra.mxu0 %v388
  %572 = vmatprep.subr.mxu0 %v392
  %573 = vmatpush1.msra.mxu0 %v391
  %574 = vmatprep.subr.mxu0 %v395
  %575 = vmatpush1.msra.mxu0 %v394
  %576 = vmatprep.subr.mxu0 %v398
  %577 = vmatpush1.msra.mxu0 %v397
  %578 = vmatprep.subr.mxu0 %v401
  %579 = vmatpush1.msra.mxu0 %v400
  %580 = vmatprep.mubr.f32.mxu0 %v304
  %581 = vmatmul.mubr.f32.gmra.mrb[0].mxu0 %v303
  %v582 = vpop.f32.mrb[0].mxu0
  %v583 = vadd.f32 %v504, %v582
  %v584 = vpop.f32.mrb[0].mxu0
  %v585 = vadd.f32 %v508, %v584
  %586 = vdwg.mxu0
  %587 = vmatprep.subr.mxu0 %v404
  %588 = vmatpush1.msra.mxu0 %v403
  %589 = vmatprep.subr.mxu0 %v407
  %590 = vmatpush1.msra.mxu0 %v406
  %591 = vmatprep.subr.mxu0 %v410
  %592 = vmatpush1.msra.mxu0 %v409
  %593 = vmatprep.subr.mxu0 %v413
  %594 = vmatpush1.msra.mxu0 %v412
  %595 = vmatprep.subr.mxu0 %v416
  %596 = vmatpush1.msra.mxu0 %v415
  %597 = vmatprep.subr.mxu0 %v419
  %598 = vmatpush1.msra.mxu0 %v418
  %599 = vmatprep.subr.mxu0 %v422
  %600 = vmatpush1.msra.mxu0 %v421
  %601 = vmatprep.subr.mxu0 %v425
  %602 = vmatpush1.msra.mxu0 %v424
  %603 = vmatprep.subr.mxu0 %v428
  %604 = vmatpush1.msra.mxu0 %v427
  %605 = vmatprep.subr.mxu0 %v431
  %606 = vmatpush1.msra.mxu0 %v430
  %607 = vmatprep.subr.mxu0 %v434
  %608 = vmatpush1.msra.mxu0 %v433
  %609 = vmatprep.subr.mxu0 %v437
  %610 = vmatpush1.msra.mxu0 %v436
  %611 = vmatprep.subr.mxu0 %v440
  %612 = vmatpush1.msra.mxu0 %v439
  %613 = vmatprep.subr.mxu0 %v443
  %614 = vmatpush1.msra.mxu0 %v442
  %615 = vmatprep.subr.mxu0 %v446
  %616 = vmatpush1.msra.mxu0 %v445
  %617 = vmatprep.subr.mxu0 %v449
  %618 = vmatpush1.msra.mxu0 %v448
  %619 = vmatprep.subr.mxu0 %v452
  %620 = vmatpush1.msra.mxu0 %v451
  %621 = vmatprep.subr.mxu0 %v455
  %622 = vmatpush1.msra.mxu0 %v454
  %623 = vmatprep.subr.mxu0 %v458
  %624 = vmatpush1.msra.mxu0 %v457
  %625 = vmatprep.subr.mxu0 %v461
  %626 = vmatpush1.msra.mxu0 %v460
  %627 = vmatprep.subr.mxu0 %v464
  %628 = vmatpush1.msra.mxu0 %v463
  %629 = vmatprep.subr.mxu0 %v467
  %630 = vmatpush1.msra.mxu0 %v466
  %631 = vmatprep.subr.mxu0 %v470
  %632 = vmatpush1.msra.mxu0 %v469
  %633 = vmatprep.subr.mxu0 %v473
  %634 = vmatpush1.msra.mxu0 %v472
  %635 = vmatprep.subr.mxu0 %v476
  %636 = vmatpush1.msra.mxu0 %v475
  %637 = vmatprep.subr.mxu0 %v479
  %638 = vmatpush1.msra.mxu0 %v478
  %639 = vmatprep.subr.mxu0 %v482
  %640 = vmatpush1.msra.mxu0 %v481
  %641 = vmatprep.subr.mxu0 %v485
  %642 = vmatpush1.msra.mxu0 %v484
  %643 = vmatprep.subr.mxu0 %v488
  %644 = vmatpush1.msra.mxu0 %v487
  %645 = vmatprep.subr.mxu0 %v491
  %646 = vmatpush1.msra.mxu0 %v490
  %647 = vmatprep.subr.mxu0 %v494
  %648 = vmatpush1.msra.mxu0 %v493
  %649 = vmatprep.subr.mxu0 %v497
  %650 = vmatpush1.msra.mxu0 %v496
  %651 = vmatprep.mubr.f32.mxu0 %v306
  %652 = vmatmul.mubr.f32.gmra.mrb[0].mxu0 %v305
  %v653 = vpop.f32.mrb[0].mxu0
  %v654 = vadd.f32 %v583, %v653
  %v655 = vpop.f32.mrb[0].mxu0
  %v656 = vadd.f32 %v585, %v655
  %657 = vdwg.mxu0
  %658 = vmatprep.subr.mxu0 0.0
  %659 = vmatpush1.msra.mxu0 %v309
  %660 = vmatprep.subr.mxu0 0.0
  %661 = vmatpush1.msra.mxu0 %v312
  %662 = vmatprep.subr.mxu0 0.0
  %663 = vmatpush1.msra.mxu0 %v315
  %664 = vmatprep.subr.mxu0 0.0
  %665 = vmatpush1.msra.mxu0 %v318
  %666 = vmatprep.subr.mxu0 0.0
  %667 = vmatpush1.msra.mxu0 %v321
  %668 = vmatprep.subr.mxu0 0.0
  %669 = vmatpush1.msra.mxu0 %v324
  %670 = vmatprep.subr.mxu0 0.0
  %671 = vmatpush1.msra.mxu0 %v327
  %672 = vmatprep.subr.mxu0 0.0
  %673 = vmatpush1.msra.mxu0 %v330
  %674 = vmatprep.subr.mxu0 0.0
  %675 = vmatpush1.msra.mxu0 %v333
  %676 = vmatprep.subr.mxu0 0.0
  %677 = vmatpush1.msra.mxu0 %v336
  %678 = vmatprep.subr.mxu0 0.0
  %679 = vmatpush1.msra.mxu0 %v339
  %680 = vmatprep.subr.mxu0 0.0
  %681 = vmatpush1.msra.mxu0 %v342
  %682 = vmatprep.subr.mxu0 0.0
  %683 = vmatpush1.msra.mxu0 %v345
  %684 = vmatprep.subr.mxu0 0.0
  %685 = vmatpush1.msra.mxu0 %v348
  %686 = vmatprep.subr.mxu0 0.0
  %687 = vmatpush1.msra.mxu0 %v351
  %688 = vmatprep.subr.mxu0 0.0
  %689 = vmatpush1.msra.mxu0 %v354
  %690 = vmatprep.subr.mxu0 0.0
  %691 = vmatpush1.msra.mxu0 %v357
  %692 = vmatprep.subr.mxu0 0.0
  %693 = vmatpush1.msra.mxu0 %v360
  %694 = vmatprep.subr.mxu0 0.0
  %695 = vmatpush1.msra.mxu0 %v363
  %696 = vmatprep.subr.mxu0 0.0
  %697 = vmatpush1.msra.mxu0 %v366
  %698 = vmatprep.subr.mxu0 0.0
  %699 = vmatpush1.msra.mxu0 %v369
  %700 = vmatprep.subr.mxu0 0.0
  %701 = vmatpush1.msra.mxu0 %v372
  %702 = vmatprep.subr.mxu0 0.0
  %703 = vmatpush1.msra.mxu0 %v375
  %704 = vmatprep.subr.mxu0 0.0
  %705 = vmatpush1.msra.mxu0 %v378
  %706 = vmatprep.subr.mxu0 0.0
  %707 = vmatpush1.msra.mxu0 %v381
  %708 = vmatprep.subr.mxu0 0.0
  %709 = vmatpush1.msra.mxu0 %v384
  %710 = vmatprep.subr.mxu0 0.0
  %711 = vmatpush1.msra.mxu0 %v387
  %712 = vmatprep.subr.mxu0 0.0
  %713 = vmatpush1.msra.mxu0 %v390
  %714 = vmatprep.subr.mxu0 0.0
  %715 = vmatpush1.msra.mxu0 %v393
  %716 = vmatprep.subr.mxu0 0.0
  %717 = vmatpush1.msra.mxu0 %v396
  %718 = vmatprep.subr.mxu0 0.0
  %719 = vmatpush1.msra.mxu0 %v399
  %720 = vmatprep.subr.mxu0 0.0
  %721 = vmatpush1.msra.mxu0 %v402
  %722 = vmatprep.mubr.f32.mxu0 %v304
  %723 = vmatmul.mubr.f32.gmra.mrb[0].mxu0 %v303
  %v724 = vpop.f32.mrb[0].mxu0
  %v725 = vadd.f32 %v512, %v724
  %v726 = vpop.f32.mrb[0].mxu0
  %727 = vdwg.mxu0
  %728 = vmatprep.subr.mxu0 0.0
  %729 = vmatpush1.msra.mxu0 %v405
  %730 = vmatprep.subr.mxu0 0.0
  %731 = vmatpush1.msra.mxu0 %v408
  %732 = vmatprep.subr.mxu0 0.0
  %733 = vmatpush1.msra.mxu0 %v411
  %734 = vmatprep.subr.mxu0 0.0
  %735 = vmatpush1.msra.mxu0 %v414
  %736 = vmatprep.subr.mxu0 0.0
  %737 = vmatpush1.msra.mxu0 %v417
  %738 = vmatprep.subr.mxu0 0.0
  %739 = vmatpush1.msra.mxu0 %v420
  %740 = vmatprep.subr.mxu0 0.0
  %741 = vmatpush1.msra.mxu0 %v423
  %742 = vmatprep.subr.mxu0 0.0
  %743 = vmatpush1.msra.mxu0 %v426
  %744 = vmatprep.subr.mxu0 0.0
  %745 = vmatpush1.msra.mxu0 %v429
  %746 = vmatprep.subr.mxu0 0.0
  %747 = vmatpush1.msra.mxu0 %v432
  %748 = vmatprep.subr.mxu0 0.0
  %749 = vmatpush1.msra.mxu0 %v435
  %750 = vmatprep.subr.mxu0 0.0
  %751 = vmatpush1.msra.mxu0 %v438
  %752 = vmatprep.subr.mxu0 0.0
  %753 = vmatpush1.msra.mxu0 %v441
  %754 = vmatprep.subr.mxu0 0.0
  %755 = vmatpush1.msra.mxu0 %v444
  %756 = vmatprep.subr.mxu0 0.0
  %757 = vmatpush1.msra.mxu0 %v447
  %758 = vmatprep.subr.mxu0 0.0
  %759 = vmatpush1.msra.mxu0 %v450
  %760 = vmatprep.subr.mxu0 0.0
  %761 = vmatpush1.msra.mxu0 %v453
  %762 = vmatprep.subr.mxu0 0.0
  %763 = vmatpush1.msra.mxu0 %v456
  %764 = vmatprep.subr.mxu0 0.0
  %765 = vmatpush1.msra.mxu0 %v459
  %766 = vmatprep.subr.mxu0 0.0
  %767 = vmatpush1.msra.mxu0 %v462
  %768 = vmatprep.subr.mxu0 0.0
  %769 = vmatpush1.msra.mxu0 %v465
  %770 = vmatprep.subr.mxu0 0.0
  %771 = vmatpush1.msra.mxu0 %v468
  %772 = vmatprep.subr.mxu0 0.0
  %773 = vmatpush1.msra.mxu0 %v471
  %774 = vmatprep.subr.mxu0 0.0
  %775 = vmatpush1.msra.mxu0 %v474
  %776 = vmatprep.subr.mxu0 0.0
  %777 = vmatpush1.msra.mxu0 %v477
  %778 = vmatprep.subr.mxu0 0.0
  %779 = vmatpush1.msra.mxu0 %v480
  %780 = vmatprep.subr.mxu0 0.0
  %781 = vmatpush1.msra.mxu0 %v483
  %782 = vmatprep.subr.mxu0 0.0
  %783 = vmatpush1.msra.mxu0 %v486
  %784 = vmatprep.subr.mxu0 0.0
  %785 = vmatpush1.msra.mxu0 %v489
  %786 = vmatprep.subr.mxu0 0.0
  %787 = vmatpush1.msra.mxu0 %v492
  %788 = vmatprep.subr.mxu0 0.0
  %789 = vmatpush1.msra.mxu0 %v495
  %790 = vmatprep.subr.mxu0 0.0
  %791 = vmatpush1.msra.mxu0 %v498
  %792 = vmatprep.mubr.f32.mxu0 %v306
  %793 = vmatmul.mubr.f32.gmra.mrb[0].mxu0 %v305
  %v794 = vpop.f32.mrb[0].mxu0
  %v795 = vadd.f32 %v725, %v794
  %v796 = vpop.f32.mrb[0].mxu0
  %797 = vdwg.mxu0
  %v798 = vld [vmem:[%s7] sm:$0x7]
  %v799 = vld [vmem:[%s8] sm:$0x7]
  %v800 = vadd.f32 %v654, %v656
  %v801 = vadd.f32 %v800, %v795
  %802 = vadd.xlane.f32.xlu0 %v801
  %v803 = vpop.xlane.xlu0 %802
  %v804 = vmul.f32 %v803, 0.0033333334
  %v805 = vmul.f32 %v654, %v654
  %v806 = vmul.f32 %v656, %v656
  %v807 = vmul.f32 %v795, %v795
  %v808 = vadd.f32 %v805, %v806
  %v809 = vadd.f32 %v808, %v807
  %810 = vadd.xlane.f32.xlu0 %v809
  %v811 = vpop.xlane.xlu0 %810
  %v812 = vmul.f32 %v811, 0.0033333334
  %v813 = vmul.f32 %v804, %v804
  %v814 = vsub.f32 %v812, %v813
  %v815 = vmax.f32 %v814, 0.0
  %v816 = vadd.f32 %v815, 1e-05
  %v817 = vrsqrt.pop %v816
  %v818 = vsub.f32 %v654, %v804
  %v819 = vsub.f32 %v656, %v804
  %v820 = vsub.f32 %v795, %v804
  %v821 = vmul.f32 %v818, %v817
  %v822 = vmul.f32 %v819, %v817
  %v823 = vmul.f32 %v820, %v817
  %v825 = vlaneseq
  %v826 = vshrl.u32 %v825, 7
  %v827 = vsub.s32 0, %v826
  %v828 = vrot.slane %v798, %v827
  %v829 = vlaneseq
  %v830 = vshrl.u32 %v829, 7
  %v831 = vsub.s32 1, %v830
  %v832 = vrot.slane %v798, %v831
  %v833 = vlaneseq
  %v834 = vshrl.u32 %v833, 7
  %v835 = vsub.s32 2, %v834
  %v836 = vrot.slane %v798, %v835
  %v840 = vmul.f32 %v821, %v828
  %v841 = vmul.f32 %v822, %v832
  %v842 = vmul.f32 %v823, %v836
  %v844 = vlaneseq
  %v845 = vshrl.u32 %v844, 7
  %v846 = vsub.s32 0, %v845
  %v847 = vrot.slane %v799, %v846
  %v848 = vlaneseq
  %v849 = vshrl.u32 %v848, 7
  %v850 = vsub.s32 1, %v849
  %v851 = vrot.slane %v799, %v850
  %v852 = vlaneseq
  %v853 = vshrl.u32 %v852, 7
  %v854 = vsub.s32 2, %v853
  %v855 = vrot.slane %v799, %v854
  %v859 = vadd.f32 %v840, %v847
  %v860 = vadd.f32 %v841, %v851
  %v861 = vadd.f32 %v842, %v855
  %v862 = vmax.f32 %v859, 0.0
  %v863 = vmax.f32 %v860, 0.0
  %v864 = vmax.f32 %v861, 0.0
  %v865 = vld [vmem:[%s9] sm:$0xff]
  %v866 = vld [vmem:[%s9 + $0x8] sm:$0xff]
  %v867 = vld [vmem:[%s9 + $0x10] sm:$0xff]
  %v868 = vld [vmem:[%s9 + $0x18] sm:$0xff]
  %v869 = vld [vmem:[%s9 + $0x20] sm:$0xff]
  %v870 = vld [vmem:[%s9 + $0x28] sm:$0xff]
  %v871 = vld [vmem:[%s9 + $0x30] sm:$0xff]
  %v872 = vld [vmem:[%s9 + $0x38] sm:$0xff]
  %v873 = vld [vmem:[%s9 + $0x40] sm:$0xff]
  %v874 = vld [vmem:[%s9 + $0x48] sm:$0xff]
  %v875 = vld [vmem:[%s9 + $0x50] sm:$0xff]
  %v876 = vld [vmem:[%s9 + $0x58] sm:$0xff]
  %v877 = vld [vmem:[%s9 + $0x60] sm:$0xff]
  %v878 = vld [vmem:[%s9 + $0x68] sm:$0xff]
  %v879 = vld [vmem:[%s9 + $0x70] sm:$0xff]
  %v880 = vld [vmem:[%s9 + $0x78] sm:$0xff]
  %v881 = vld [vmem:[%s9 + $0x80] sm:$0xff]
  %v882 = vld [vmem:[%s9 + $0x88] sm:$0xff]
  %v883 = vld [vmem:[%s9 + $0x90] sm:$0xff]
  %v884 = vld [vmem:[%s9 + $0x98] sm:$0xff]
  %v885 = vld [vmem:[%s9 + $0xa0] sm:$0xff]
  %v886 = vld [vmem:[%s9 + $0xa8] sm:$0xff]
  %v887 = vld [vmem:[%s9 + $0xb0] sm:$0xff]
  %v888 = vld [vmem:[%s9 + $0xb8] sm:$0xff]
  %v889 = vld [vmem:[%s9 + $0xc0] sm:$0xff]
  %v890 = vld [vmem:[%s9 + $0xc8] sm:$0xff]
  %v891 = vld [vmem:[%s9 + $0xd0] sm:$0xff]
  %v892 = vld [vmem:[%s9 + $0xd8] sm:$0xff]
  %v893 = vld [vmem:[%s9 + $0xe0] sm:$0xff]
  %v894 = vld [vmem:[%s9 + $0xe8] sm:$0xff]
  %v895 = vld [vmem:[%s9 + $0xf0] sm:$0xff]
  %v896 = vld [vmem:[%s9 + $0xf8] sm:$0xff]
  %v897 = vld [vmem:[%s9 + $0x100] sm:$0xff]
  %v898 = vld [vmem:[%s9 + $0x108] sm:$0xff]
  %v899 = vld [vmem:[%s9 + $0x110] sm:$0xff]
  %v900 = vld [vmem:[%s9 + $0x118] sm:$0xff]
  %v901 = vld [vmem:[%s9 + $0x120] sm:$0xff]
  %v902 = vld [vmem:[%s9 + $0x128] sm:$0xff]
  %v903 = vld [vmem:[%s9 + $0x130] sm:$0xff]
  %v904 = vld [vmem:[%s9 + $0x138] sm:$0xff]
  %v905 = vld [vmem:[%s9 + $0x140] sm:$0xff]
  %v906 = vld [vmem:[%s9 + $0x148] sm:$0xff]
  %v907 = vld [vmem:[%s9 + $0x150] sm:$0xff]
  %v908 = vld [vmem:[%s9 + $0x158] sm:$0xff]
  %v909 = vld [vmem:[%s9 + $0x160] sm:$0xff]
  %v910 = vld [vmem:[%s9 + $0x168] sm:$0xff]
  %v911 = vld [vmem:[%s9 + $0x170] sm:$0xff]
  %v912 = vld [vmem:[%s9 + $0x178] sm:$0xff]
  %v913 = vld [vmem:[%s10] sm:$0x1]
  %v915 = vlaneseq
  %v916 = vshrl.u32 %v915, 7
  %v917 = vsub.s32 0, %v916
  %v918 = vrot.slane %v913, %v917
  %920 = vmatprep.subr.mxu0 0.0
  %921 = vmatpush1.msra.mxu0 %v865
  %922 = vmatprep.subr.mxu0 0.0
  %923 = vmatpush1.msra.mxu0 %v866
  %924 = vmatprep.subr.mxu0 0.0
  %925 = vmatpush1.msra.mxu0 %v867
  %926 = vmatprep.subr.mxu0 0.0
  %927 = vmatpush1.msra.mxu0 %v868
  %928 = vmatprep.subr.mxu0 0.0
  %929 = vmatpush1.msra.mxu0 %v869
  %930 = vmatprep.subr.mxu0 0.0
  %931 = vmatpush1.msra.mxu0 %v870
  %932 = vmatprep.subr.mxu0 0.0
  %933 = vmatpush1.msra.mxu0 %v871
  %934 = vmatprep.subr.mxu0 0.0
  %935 = vmatpush1.msra.mxu0 %v872
  %936 = vmatprep.subr.mxu0 0.0
  %937 = vmatpush1.msra.mxu0 %v873
  %938 = vmatprep.subr.mxu0 0.0
  %939 = vmatpush1.msra.mxu0 %v874
  %940 = vmatprep.subr.mxu0 0.0
  %941 = vmatpush1.msra.mxu0 %v875
  %942 = vmatprep.subr.mxu0 0.0
  %943 = vmatpush1.msra.mxu0 %v876
  %944 = vmatprep.subr.mxu0 0.0
  %945 = vmatpush1.msra.mxu0 %v877
  %946 = vmatprep.subr.mxu0 0.0
  %947 = vmatpush1.msra.mxu0 %v878
  %948 = vmatprep.subr.mxu0 0.0
  %949 = vmatpush1.msra.mxu0 %v879
  %950 = vmatprep.subr.mxu0 0.0
  %951 = vmatpush1.msra.mxu0 %v880
  %952 = vmatprep.subr.mxu0 0.0
  %953 = vmatpush1.msra.mxu0 %v881
  %954 = vmatprep.subr.mxu0 0.0
  %955 = vmatpush1.msra.mxu0 %v882
  %956 = vmatprep.subr.mxu0 0.0
  %957 = vmatpush1.msra.mxu0 %v883
  %958 = vmatprep.subr.mxu0 0.0
  %959 = vmatpush1.msra.mxu0 %v884
  %960 = vmatprep.subr.mxu0 0.0
  %961 = vmatpush1.msra.mxu0 %v885
  %962 = vmatprep.subr.mxu0 0.0
  %963 = vmatpush1.msra.mxu0 %v886
  %964 = vmatprep.subr.mxu0 0.0
  %965 = vmatpush1.msra.mxu0 %v887
  %966 = vmatprep.subr.mxu0 0.0
  %967 = vmatpush1.msra.mxu0 %v888
  %968 = vmatprep.subr.mxu0 0.0
  %969 = vmatpush1.msra.mxu0 %v889
  %970 = vmatprep.subr.mxu0 0.0
  %971 = vmatpush1.msra.mxu0 %v890
  %972 = vmatprep.subr.mxu0 0.0
  %973 = vmatpush1.msra.mxu0 %v891
  %974 = vmatprep.subr.mxu0 0.0
  %975 = vmatpush1.msra.mxu0 %v892
  %976 = vmatprep.subr.mxu0 0.0
  %977 = vmatpush1.msra.mxu0 %v893
  %978 = vmatprep.subr.mxu0 0.0
  %979 = vmatpush1.msra.mxu0 %v894
  %980 = vmatprep.subr.mxu0 0.0
  %981 = vmatpush1.msra.mxu0 %v895
  %982 = vmatprep.subr.mxu0 0.0
  %983 = vmatpush1.msra.mxu0 %v896
  %984 = vmatprep.mubr.f32.mxu0 %v863
  %985 = vmatmul.mubr.f32.gmra.mrb[0].mxu0 %v862
  %v986 = vpop.f32.mrb[0].mxu0
  %v987 = vadd.f32 %v918, %v986
  %v988 = vpop.f32.mrb[0].mxu0
  %989 = vdwg.mxu0
  %990 = vmatprep.subr.mxu0 0.0
  %991 = vmatpush1.msra.mxu0 %v897
  %992 = vmatprep.subr.mxu0 0.0
  %993 = vmatpush1.msra.mxu0 %v898
  %994 = vmatprep.subr.mxu0 0.0
  %995 = vmatpush1.msra.mxu0 %v899
  %996 = vmatprep.subr.mxu0 0.0
  %997 = vmatpush1.msra.mxu0 %v900
  %998 = vmatprep.subr.mxu0 0.0
  %999 = vmatpush1.msra.mxu0 %v901
  %1000 = vmatprep.subr.mxu0 0.0
  %1001 = vmatpush1.msra.mxu0 %v902
  %1002 = vmatprep.subr.mxu0 0.0
  %1003 = vmatpush1.msra.mxu0 %v903
  %1004 = vmatprep.subr.mxu0 0.0
  %1005 = vmatpush1.msra.mxu0 %v904
  %1006 = vmatprep.subr.mxu0 0.0
  %1007 = vmatpush1.msra.mxu0 %v905
  %1008 = vmatprep.subr.mxu0 0.0
  %1009 = vmatpush1.msra.mxu0 %v906
  %1010 = vmatprep.subr.mxu0 0.0
  %1011 = vmatpush1.msra.mxu0 %v907
  %1012 = vmatprep.subr.mxu0 0.0
  %1013 = vmatpush1.msra.mxu0 %v908
  %1014 = vmatprep.subr.mxu0 0.0
  %1015 = vmatpush1.msra.mxu0 %v909
  %1016 = vmatprep.subr.mxu0 0.0
  %1017 = vmatpush1.msra.mxu0 %v910
  %1018 = vmatprep.subr.mxu0 0.0
  %1019 = vmatpush1.msra.mxu0 %v911
  %1020 = vmatprep.subr.mxu0 0.0
  %1021 = vmatpush1.msra.mxu0 %v912
  %1022 = vmatprep.subr.mxu0 0.0
  %1023 = vmatpush1.msra.mxu0 0.0
  %1024 = vmatprep.subr.mxu0 0.0
  %1025 = vmatpush1.msra.mxu0 0.0
  %1026 = vmatprep.subr.mxu0 0.0
  %1027 = vmatpush1.msra.mxu0 0.0
  %1028 = vmatprep.subr.mxu0 0.0
  %1029 = vmatpush1.msra.mxu0 0.0
  %1030 = vmatprep.subr.mxu0 0.0
  %1031 = vmatpush1.msra.mxu0 0.0
  %1032 = vmatprep.subr.mxu0 0.0
  %1033 = vmatpush1.msra.mxu0 0.0
  %1034 = vmatprep.subr.mxu0 0.0
  %1035 = vmatpush1.msra.mxu0 0.0
  %1036 = vmatprep.subr.mxu0 0.0
  %1037 = vmatpush1.msra.mxu0 0.0
  %1038 = vmatprep.subr.mxu0 0.0
  %1039 = vmatpush1.msra.mxu0 0.0
  %1040 = vmatprep.subr.mxu0 0.0
  %1041 = vmatpush1.msra.mxu0 0.0
  %1042 = vmatprep.subr.mxu0 0.0
  %1043 = vmatpush1.msra.mxu0 0.0
  %1044 = vmatprep.subr.mxu0 0.0
  %1045 = vmatpush1.msra.mxu0 0.0
  %1046 = vmatprep.subr.mxu0 0.0
  %1047 = vmatpush1.msra.mxu0 0.0
  %1048 = vmatprep.subr.mxu0 0.0
  %1049 = vmatpush1.msra.mxu0 0.0
  %1050 = vmatprep.subr.mxu0 0.0
  %1051 = vmatpush1.msra.mxu0 0.0
  %1052 = vmatprep.subr.mxu0 0.0
  %1053 = vmatpush1.msra.mxu0 0.0
  %1054 = vmatprep.mubr.f32.mxu0 0.0
  %1055 = vmatmul.mubr.f32.gmra.mrb[0].mxu0 %v864
  %v1056 = vpop.f32.mrb[0].mxu0
  %v1057 = vadd.f32 %v987, %v1056
  %v1058 = vpop.f32.mrb[0].mxu0
  %1059 = vdwg.mxu0
  %v1060 = vtanh.pop %v1057
  %vm1061 = vcmask 15360
  %1062 = vst.msk [vmem:[%s11] sm:$0xff] %vm1061, %v1060
  // Predicated region
  $region46: #{actor_forward.1} parent=0 // pred_check
    _
  $region47: #{actor_forward.1} parent=0 // pred_check_branch
    %1064 = sbr.rel (0) target = $region49
  $region48: #{actor_forward.1} parent=0 // pred_region
    _
  $region49: #{actor_forward.1} parent=0 // pred_fallthru
    _
  // Predicated region
  $region50: #{actor_forward.1} parent=0 // pred_check
    _
  $region51: #{actor_forward.1} parent=0 // pred_check_branch
    %1066 = sbr.rel (0) target = $region53
  $region52: #{actor_forward.1} parent=0 // pred_region
    _
  $region53: #{actor_forward.1} parent=0 // pred_fallthru
    _

</llo_original>
